<compile_context>
chip_gen: v6e
topology: v6e:2x2x1
jax: 0.10.0
libtpu: 0.0.40
codegen_flags: <defaults>
</compile_context>

<pallas_src>
import jax
import jax.numpy as jnp
from jax.experimental import pallas as pl
from jax.experimental.pallas import tpu as pltpu


def regression_net_kernel(x_ref, w1_ref, b1_ref, w2_ref, b2_ref, w3_ref, b3_ref, o_ref):
    x = x_ref[...]                                          # (1, TILE), batch on lanes

    # fc1 (in_features == 1): pure VPU broadcast-multiply, no MXU.
    z1 = w1_ref[...] * x + b1_ref[...]                      # (H, TILE)
    h1 = 0.5 * (jnp.tanh(0.5 * z1) + 1.0)                   # sigmoid via one EUP op

    # fc2: H x H matmul on the MXU, exact f32 (explicit HIGHEST precision).
    z2 = jnp.dot(
        w2_ref[...], h1,
        preferred_element_type=jnp.float32,
        precision=jax.lax.Precision.HIGHEST,
    ) + b2_ref[...]                                         # (H, TILE)
    h2 = 0.5 * (jnp.tanh(0.5 * z2) + 1.0)

    # fc3: 1-row output -> keep it off the MXU. VPU multiply + sublane reduce.
    out = jnp.sum(w3_ref[...] * h2, axis=0, keepdims=True) + b3_ref[...]  # (1, TILE)
    o_ref[...] = out.astype(o_ref.dtype)                    # lane-dense store


def regression_net(x, w1, b1, w2, b2, w3, b3, *, tile=2048):
    """Forward pass of RegressionNet.

    x : (N, 1) float32
    Weights in PyTorch layout: w1 (H, 1), w2 (H, H), w3 (1, H); biases (H,), (H,), (1,).
    tile : batch tile width (lanes). Default 2048; clamped for small N and kept a
           multiple of 256 for v6e/v7x MXU / lane alignment.
    """
    N = x.shape[0]
    H = w1.shape[0]

    # Clamp the tile so tiny batches do not over-pad; keep lanes a multiple of 256.
    tile = min(tile, max(256, ((N + 255) // 256) * 256))
    n_tiles = pl.cdiv(N, tile)
    Np = n_tiles * tile

    # (N, 1) -> (1, N) is a pure metadata reshape (same row-major data order);
    # only pad (extra HBM copy) when the batch is not tile-divisible.
    xt = x.reshape(1, N)
    if Np != N:
        xt = jnp.pad(xt, ((0, 0), (0, Np - N)))
        # NOTE: padded lanes compute garbage outputs; they are sliced off below
        # and must never be read before that slice.

    # Biases as column vectors (broadcast along the lane/batch axis); w3 as a
    # column so fc3 is a VPU multiply + sublane reduce instead of a 1-row matmul.
    b1c = b1.reshape(H, 1)
    b2c = b2.reshape(H, 1)
    w3c = w3.reshape(H, 1)
    b3c = b3.reshape(1, 1)

    def resident(shape):
        # Weights/biases: one block, same index every grid step -> stay in VMEM.
        return pl.BlockSpec(shape, lambda i: (0, 0))

    out_t = pl.pallas_call(
        regression_net_kernel,
        out_shape=jax.ShapeDtypeStruct((1, Np), x.dtype),
        grid=(n_tiles,),
        in_specs=[
            pl.BlockSpec((1, tile), lambda i: (0, i)),   # x tile (batch on lanes)
            resident((H, 1)),                            # w1
            resident((H, 1)),                            # b1
            resident((H, H)),                            # w2
            resident((H, 1)),                            # b2
            resident((H, 1)),                            # w3 (column)
            resident((1, 1)),                            # b3
        ],
        out_specs=pl.BlockSpec((1, tile), lambda i: (0, i)),
        compiler_params=pltpu.CompilerParams(
            dimension_semantics=("parallel",),           # megacore split on v7x
        ),
    )(xt, w1, b1c, w2, b2c, w3c, b3c)

    out = out_t if Np == N else out_t[:, :N]
    return out.reshape(N, 1)


def init_params(key, n_hidden):
    """Deterministic init mimicking torch.nn.Linear (uniform +/- 1/sqrt(fan_in)),
    stored in PyTorch (out, in) layout."""
    def linear(key, fan_in, fan_out):
        kw, kb = jax.random.split(key)
        bound = 1.0 / jnp.sqrt(jnp.float32(fan_in))
        w = jax.random.uniform(kw, (fan_out, fan_in), jnp.float32, -bound, bound)
        b = jax.random.uniform(kb, (fan_out,), jnp.float32, -bound, bound)
        return w, b

    k1, k2, k3 = jax.random.split(key, 3)
    w1, b1 = linear(k1, 1, n_hidden)
    w2, b2 = linear(k2, n_hidden, n_hidden)
    w3, b3 = linear(k3, n_hidden, 1)
    return w1, b1, w2, b2, w3, b3


def reference_forward(x, w1, b1, w2, b2, w3, b3):
    # Exact-f32 reference (matmuls at HIGHEST precision), mirroring PyTorch CPU math.
    hp = jax.lax.Precision.HIGHEST
    h1 = jax.nn.sigmoid(jnp.dot(x, w1.T, precision=hp) + b1)
    h2 = jax.nn.sigmoid(jnp.dot(h1, w2.T, precision=hp) + b2)
    return jnp.dot(h2, w3.T, precision=hp) + b3


if __name__ == "__main__":
    n_hidden = 32

    key = jax.random.PRNGKey(0)
    kx, kp = jax.random.split(key)
    params = init_params(kp, n_hidden)

    # Small demo batch (single tile; tile auto-clamps to 256 lanes).
    x_small = jax.random.normal(kx, (8, 1), jnp.float32)
    out_small = jax.block_until_ready(regression_net(x_small, *params))
    ref_small = reference_forward(x_small, *params)
    assert out_small.shape == (8, 1)
    assert jnp.allclose(out_small, ref_small, atol=1e-5, rtol=1e-5)

    # Larger, non-tile-divisible batch to exercise the padding + tail-slice path.
    x_big = jax.random.normal(kx, (1000, 1), jnp.float32)
    out_big = jax.block_until_ready(regression_net(x_big, *params))
    ref_big = reference_forward(x_big, *params)
    assert out_big.shape == (1000, 1)
    assert jnp.allclose(out_big, ref_big, atol=1e-5, rtol=1e-5)

    print("KERNEL_OK")
</pallas_src>

<mosaic_0001>
module attributes {stable_mosaic.version = 11 : i64} {
  func.func @regression_net_kernel(%arg0: i32, %arg1: memref<1x256xf32, #tpu.memory_space<vmem>>, %arg2: memref<32x1xf32, #tpu.memory_space<vmem>>, %arg3: memref<32x1xf32, #tpu.memory_space<vmem>>, %arg4: memref<32x32xf32, #tpu.memory_space<vmem>>, %arg5: memref<32x1xf32, #tpu.memory_space<vmem>>, %arg6: memref<32x1xf32, #tpu.memory_space<vmem>>, %arg7: memref<1x1xf32, #tpu.memory_space<vmem>>, %arg8: memref<1x256xf32, #tpu.memory_space<vmem>>) attributes {dimension_semantics = [#tpu.dimension_semantics<parallel>], iteration_bounds = array<i64: 1>, scalar_prefetch = 0 : i64, scratch_operands = 0 : i64, tpu.core_type = #tpu.core_type<tc>, window_params = [{transform_indices = @transform_0, window_bounds = array<i64: 1, 256>}, {pipeline_mode = #tpu.pipeline_mode<synchronous>, transform_indices = @transform_1, window_bounds = array<i64: 32, 1>}, {pipeline_mode = #tpu.pipeline_mode<synchronous>, transform_indices = @transform_2, window_bounds = array<i64: 32, 1>}, {pipeline_mode = #tpu.pipeline_mode<synchronous>, transform_indices = @transform_3, window_bounds = array<i64: 32, 32>}, {pipeline_mode = #tpu.pipeline_mode<synchronous>, transform_indices = @transform_4, window_bounds = array<i64: 32, 1>}, {pipeline_mode = #tpu.pipeline_mode<synchronous>, transform_indices = @transform_5, window_bounds = array<i64: 32, 1>}, {pipeline_mode = #tpu.pipeline_mode<synchronous>, transform_indices = @transform_6, window_bounds = array<i64: 1, 1>}, {transform_indices = @transform_7, window_bounds = array<i64: 1, 256>}]} {
    %c0 = arith.constant 0 : index
    %c0_0 = arith.constant 0 : index
    %0 = vector.load %arg1[%c0, %c0_0] : memref<1x256xf32, #tpu.memory_space<vmem>>, vector<1x256xf32>
    %c0_1 = arith.constant 0 : index
    %c0_2 = arith.constant 0 : index
    %1 = vector.load %arg2[%c0_1, %c0_2] : memref<32x1xf32, #tpu.memory_space<vmem>>, vector<32x1xf32>
    %2 = vector.broadcast %1 : vector<32x1xf32> to vector<32x256xf32>
    %3 = vector.broadcast %0 : vector<1x256xf32> to vector<32x256xf32>
    %4 = arith.mulf %2, %3 : vector<32x256xf32>
    %c0_3 = arith.constant 0 : index
    %c0_4 = arith.constant 0 : index
    %5 = vector.load %arg3[%c0_3, %c0_4] : memref<32x1xf32, #tpu.memory_space<vmem>>, vector<32x1xf32>
    %6 = vector.broadcast %5 : vector<32x1xf32> to vector<32x256xf32>
    %7 = arith.addf %4, %6 : vector<32x256xf32>
    %cst = arith.constant 5.000000e-01 : f32
    %8 = vector.broadcast %cst : f32 to vector<32x256xf32>
    %9 = arith.mulf %8, %7 : vector<32x256xf32>
    %10 = math.tanh %9 : vector<32x256xf32>
    %cst_5 = arith.constant 1.000000e+00 : f32
    %11 = vector.broadcast %cst_5 : f32 to vector<32x256xf32>
    %12 = arith.addf %10, %11 : vector<32x256xf32>
    %cst_6 = arith.constant 5.000000e-01 : f32
    %13 = vector.broadcast %cst_6 : f32 to vector<32x256xf32>
    %14 = arith.mulf %13, %12 : vector<32x256xf32>
    %c0_7 = arith.constant 0 : index
    %c0_8 = arith.constant 0 : index
    %15 = vector.load %arg4[%c0_7, %c0_8] : memref<32x32xf32, #tpu.memory_space<vmem>>, vector<32x32xf32>
    %cst_9 = arith.constant dense<0.000000e+00> : vector<32x256xf32>
    %16 = tpu.matmul %15, %14, %cst_9 {dimension_numbers = #tpu.dot_dimension_numbers<[1], [0], [0], [1], [0, 0, 1, 1], [], []>, precision = #tpu.contract_precision<fp32>} : vector<32x32xf32>, vector<32x256xf32>, vector<32x256xf32> -> vector<32x256xf32>
    %c0_10 = arith.constant 0 : index
    %c0_11 = arith.constant 0 : index
    %17 = vector.load %arg5[%c0_10, %c0_11] : memref<32x1xf32, #tpu.memory_space<vmem>>, vector<32x1xf32>
    %18 = vector.broadcast %17 : vector<32x1xf32> to vector<32x256xf32>
    %19 = arith.addf %16, %18 : vector<32x256xf32>
    %cst_12 = arith.constant 5.000000e-01 : f32
    %20 = vector.broadcast %cst_12 : f32 to vector<32x256xf32>
    %21 = arith.mulf %20, %19 : vector<32x256xf32>
    %22 = math.tanh %21 : vector<32x256xf32>
    %cst_13 = arith.constant 1.000000e+00 : f32
    %23 = vector.broadcast %cst_13 : f32 to vector<32x256xf32>
    %24 = arith.addf %22, %23 : vector<32x256xf32>
    %cst_14 = arith.constant 5.000000e-01 : f32
    %25 = vector.broadcast %cst_14 : f32 to vector<32x256xf32>
    %26 = arith.mulf %25, %24 : vector<32x256xf32>
    %c0_15 = arith.constant 0 : index
    %c0_16 = arith.constant 0 : index
    %27 = vector.load %arg6[%c0_15, %c0_16] : memref<32x1xf32, #tpu.memory_space<vmem>>, vector<32x1xf32>
    %28 = vector.broadcast %27 : vector<32x1xf32> to vector<32x256xf32>
    %29 = arith.mulf %28, %26 : vector<32x256xf32>
    %cst_17 = arith.constant dense<0.000000e+00> : vector<256xf32>
    %30 = vector.multi_reduction <add>, %29, %cst_17 [0] : vector<32x256xf32> to vector<256xf32>
    %31 = vector.shape_cast %30 : vector<256xf32> to vector<1x256xf32>
    %c0_18 = arith.constant 0 : index
    %c0_19 = arith.constant 0 : index
    %32 = vector.load %arg7[%c0_18, %c0_19] : memref<1x1xf32, #tpu.memory_space<vmem>>, vector<1x1xf32>
    %33 = vector.broadcast %32 : vector<1x1xf32> to vector<1x256xf32>
    %34 = arith.addf %31, %33 : vector<1x256xf32>
    %c0_20 = arith.constant 0 : index
    %c0_21 = arith.constant 0 : index
    %35 = vector.load %arg8[%c0_20, %c0_21] : memref<1x256xf32, #tpu.memory_space<vmem>>, vector<1x256xf32>
    tpu.vector_store %arg8[%c0_20, %c0_21], %34 {strides = array<i32>} : memref<1x256xf32, #tpu.memory_space<vmem>>, vector<1x256xf32>,
    return
  }
  func.func @transform_0(%arg0: i32) -> (i32, i32) {
    %c0_i32 = arith.constant 0 : i32
    %c0_i32_0 = arith.constant 0 : i32
    return %c0_i32, %arg0 : i32, i32
  }
  func.func @transform_1(%arg0: i32) -> (i32, i32) {
    %c0_i32 = arith.constant 0 : i32
    %c0_i32_0 = arith.constant 0 : i32
    %c0_i32_1 = arith.constant 0 : i32
    return %c0_i32, %c0_i32_0 : i32, i32
  }
  func.func @transform_2(%arg0: i32) -> (i32, i32) {
    %c0_i32 = arith.constant 0 : i32
    %c0_i32_0 = arith.constant 0 : i32
    %c0_i32_1 = arith.constant 0 : i32
    return %c0_i32, %c0_i32_0 : i32, i32
  }
  func.func @transform_3(%arg0: i32) -> (i32, i32) {
    %c0_i32 = arith.constant 0 : i32
    %c0_i32_0 = arith.constant 0 : i32
    %c0_i32_1 = arith.constant 0 : i32
    return %c0_i32, %c0_i32_0 : i32, i32
  }
  func.func @transform_4(%arg0: i32) -> (i32, i32) {
    %c0_i32 = arith.constant 0 : i32
    %c0_i32_0 = arith.constant 0 : i32
    %c0_i32_1 = arith.constant 0 : i32
    return %c0_i32, %c0_i32_0 : i32, i32
  }
  func.func @transform_5(%arg0: i32) -> (i32, i32) {
    %c0_i32 = arith.constant 0 : i32
    %c0_i32_0 = arith.constant 0 : i32
    %c0_i32_1 = arith.constant 0 : i32
    return %c0_i32, %c0_i32_0 : i32, i32
  }
  func.func @transform_6(%arg0: i32) -> (i32, i32) {
    %c0_i32 = arith.constant 0 : i32
    %c0_i32_0 = arith.constant 0 : i32
    %c0_i32_1 = arith.constant 0 : i32
    return %c0_i32, %c0_i32_0 : i32, i32
  }
  func.func @transform_7(%arg0: i32) -> (i32, i32) {
    %c0_i32 = arith.constant 0 : i32
    %c0_i32_0 = arith.constant 0 : i32
    return %c0_i32, %arg0 : i32, i32
  }
}

</mosaic_0001>

<llo_original>
// kernel: tpu_custom_call.1
$region0: #{tpu_custom_call.1}
  #allocation0 [shape = 'u32[]', space=smem, size = 0x4, offset = 0x4, fixed_abs, tag = 'smem constant byte address 0x4 - core index']
  #allocation1 [shape = 'u32[144,128]{1,0:T(1,128)}', space=vmem, size = 0x12000, scoped, tag = 'internal scratch']
  #allocation2 [shape = 'f32[1,1]{1,0:T(1,128)S(1)}', space=vmem, size = 0x200, scoped, tag = 'scoped memory for tpu_custom_call.1']
  %s0 = inlined_call_operand.vmem [shape: f32[1,256], index: 0, kind: input, shape index: {}]
  %s1 = inlined_call_operand.vmem [shape: f32[32,1], index: 1, kind: input, shape index: {}]
  %s2 = inlined_call_operand.vmem [shape: f32[32,1], index: 2, kind: input, shape index: {}]
  %s3 = inlined_call_operand.vmem [shape: f32[32,32], index: 3, kind: input, shape index: {}]
  %s4 = inlined_call_operand.vmem [shape: f32[32,1], index: 4, kind: input, shape index: {}]
  %s5 = inlined_call_operand.vmem [shape: f32[32,1], index: 5, kind: input, shape index: {}]
  %s6 = inlined_call_operand.<no memory space> [shape: f32[1,1], index: 6, kind: input, shape index: {}]
  %s7 = inlined_call_operand.hbm [shape: f32[1,256], index: 7, kind: output, shape index: {}]
  %s8 = sld [smem:[#allocation0]]
  $region38: #{tpu_custom_call.1} parent=0
    _
  %s10 = ssub.s32 1, %s8
  %s11 = scalar_select 0, %s10, %s8
  %v12 = vstv %s6
  %13 = vst [vmem:[#allocation2] sm:$0x1] %v12
  $region1: #{tpu_custom_call.1} parent=0
    #allocation3 [shape = 'u8[1024]{0}', space=vmem, size = 0x400, scoped, tag = 'output window, operand 0, single buffered']
    #allocation4 [shape = 's32[1]{0}', space=sflag, size = 0x4, scoped, tag = 'scoped memory for tpu_custom_call.1']
    %14 = vsyncpa [#allocation4], 0
    // Predicated region
    $region2: #{tpu_custom_call.1} parent=1 // pred_check
      _
    $region3: #{tpu_custom_call.1} parent=1 // pred_check_branch
      %16 = sbr.rel (0) target = $region5
    $region4: #{tpu_custom_call.1} parent=1 // pred_region
      _
    $region5: #{tpu_custom_call.1} parent=1 // pred_fallthru
      _
    // Predicated region
    $region6: #{tpu_custom_call.1} parent=1 // pred_check
      _
    $region7: #{tpu_custom_call.1} parent=1 // pred_check_branch
      %18 = sbr.rel (0) target = $region9
    $region8: #{tpu_custom_call.1} parent=1 // pred_region
      _
    $region9: #{tpu_custom_call.1} parent=1 // pred_fallthru
      _
    // Predicated region
    $region10: #{tpu_custom_call.1} parent=1 // pred_check
      _
    $region11: #{tpu_custom_call.1} parent=1 // pred_check_branch
      %20 = sbr.rel (0) target = $region13
    $region12: #{tpu_custom_call.1} parent=1 // pred_region
      _
    $region13: #{tpu_custom_call.1} parent=1 // pred_fallthru
      _
    // Predicated region
    $region14: #{tpu_custom_call.1} parent=1 // pred_check
      _
    $region15: #{tpu_custom_call.1} parent=1 // pred_check_branch
      %22 = sbr.rel (0) target = $region17
    $region16: #{tpu_custom_call.1} parent=1 // pred_region
      _
    $region17: #{tpu_custom_call.1} parent=1 // pred_fallthru
      _
    // Predicated region
    $region18: #{tpu_custom_call.1} parent=1 // pred_check
      _
    $region19: #{tpu_custom_call.1} parent=1 // pred_check_branch
      %24 = sbr.rel (0) target = $region21
    $region20: #{tpu_custom_call.1} parent=1 // pred_region
      _
    $region21: #{tpu_custom_call.1} parent=1 // pred_fallthru
      _
    // Predicated region
    $region22: #{tpu_custom_call.1} parent=1 // pred_check
      _
    $region23: #{tpu_custom_call.1} parent=1 // pred_check_branch
      %26 = sbr.rel (0) target = $region25
    $region24: #{tpu_custom_call.1} parent=1 // pred_region
      _
    $region25: #{tpu_custom_call.1} parent=1 // pred_fallthru
      _
    // Predicated region
    $region26: #{tpu_custom_call.1} parent=1 // pred_check
      _
    $region27: #{tpu_custom_call.1} parent=1 // pred_check_branch
      %28 = sbr.rel (0) target = $region29
    $region28: #{tpu_custom_call.1} parent=1 // pred_region
      _
    $region29: #{tpu_custom_call.1} parent=1 // pred_fallthru
      _
    %v29 = vld [vmem:[%s0] sm:$0x3]
    %v30 = vld [vmem:[%s1] sm:$0xff]
    %v31 = vld [vmem:[%s1 + $0x8] sm:$0xff]
    %v32 = vld [vmem:[%s1 + $0x10] sm:$0xff]
    %v33 = vld [vmem:[%s1 + $0x18] sm:$0xff]
    %35 = vset.pattern.permute.xlu0 0
    %36 = vperm.xlu0 %35, %v30
    %v37 = vpop.permute.xlu0 %36
    %40 = vset.pattern.permute.xlu0 0
    %41 = vperm.xlu0 %40, %v31
    %v42 = vpop.permute.xlu0 %41
    %45 = vset.pattern.permute.xlu0 0
    %46 = vperm.xlu0 %45, %v32
    %v47 = vpop.permute.xlu0 %46
    %50 = vset.pattern.permute.xlu0 0
    %51 = vperm.xlu0 %50, %v33
    %v52 = vpop.permute.xlu0 %51
    %v55 = vlaneseq
    %v56 = vshrl.u32 %v55, 7
    %v57 = vsub.s32 0, %v56
    %v58 = vrot.slane %v29, %v57
    %v59 = vlaneseq
    %v60 = vshrl.u32 %v59, 7
    %v61 = vsub.s32 1, %v60
    %v62 = vrot.slane %v29, %v61
    %v65 = vmul.f32 %v37, %v58
    %v66 = vmul.f32 %v37, %v62
    %v67 = vmul.f32 %v42, %v58
    %v68 = vmul.f32 %v42, %v62
    %v69 = vmul.f32 %v47, %v58
    %v70 = vmul.f32 %v47, %v62
    %v71 = vmul.f32 %v52, %v58
    %v72 = vmul.f32 %v52, %v62
    %v73 = vld [vmem:[%s2] sm:$0xff]
    %v74 = vld [vmem:[%s2 + $0x8] sm:$0xff]
    %v75 = vld [vmem:[%s2 + $0x10] sm:$0xff]
    %v76 = vld [vmem:[%s2 + $0x18] sm:$0xff]
    %78 = vset.pattern.permute.xlu0 0
    %79 = vperm.xlu0 %78, %v73
    %v80 = vpop.permute.xlu0 %79
    %83 = vset.pattern.permute.xlu0 0
    %84 = vperm.xlu0 %83, %v74
    %v85 = vpop.permute.xlu0 %84
    %88 = vset.pattern.permute.xlu0 0
    %89 = vperm.xlu0 %88, %v75
    %v90 = vpop.permute.xlu0 %89
    %93 = vset.pattern.permute.xlu0 0
    %94 = vperm.xlu0 %93, %v76
    %v95 = vpop.permute.xlu0 %94
    %v97 = vadd.f32 %v65, %v80
    %v98 = vadd.f32 %v66, %v80
    %v99 = vadd.f32 %v67, %v85
    %v100 = vadd.f32 %v68, %v85
    %v101 = vadd.f32 %v69, %v90
    %v102 = vadd.f32 %v70, %v90
    %v103 = vadd.f32 %v71, %v95
    %v104 = vadd.f32 %v72, %v95
    %v105 = vmul.f32 %v97, 0.5
    %v106 = vmul.f32 %v98, 0.5
    %v107 = vmul.f32 %v99, 0.5
    %v108 = vmul.f32 %v100, 0.5
    %v109 = vmul.f32 %v101, 0.5
    %v110 = vmul.f32 %v102, 0.5
    %v111 = vmul.f32 %v103, 0.5
    %v112 = vmul.f32 %v104, 0.5
    %v113 = vtanh.pop %v105
    %v114 = vtanh.pop %v106
    %v115 = vtanh.pop %v107
    %v116 = vtanh.pop %v108
    %v117 = vtanh.pop %v109
    %v118 = vtanh.pop %v110
    %v119 = vtanh.pop %v111
    %v120 = vtanh.pop %v112
    %v121 = vadd.f32 %v113, 1.0
    %v122 = vadd.f32 %v114, 1.0
    %v123 = vadd.f32 %v115, 1.0
    %v124 = vadd.f32 %v116, 1.0
    %v125 = vadd.f32 %v117, 1.0
    %v126 = vadd.f32 %v118, 1.0
    %v127 = vadd.f32 %v119, 1.0
    %v128 = vadd.f32 %v120, 1.0
    %v129 = vmul.f32 %v121, 0.5
    %v130 = vmul.f32 %v122, 0.5
    %v131 = vmul.f32 %v123, 0.5
    %v132 = vmul.f32 %v124, 0.5
    %v133 = vmul.f32 %v125, 0.5
    %v134 = vmul.f32 %v126, 0.5
    %v135 = vmul.f32 %v127, 0.5
    %v136 = vmul.f32 %v128, 0.5
    %v137 = vld [vmem:[%s3] sm:$0xff]
    %v138 = vld [vmem:[%s3 + $0x8] sm:$0xff]
    %v139 = vld [vmem:[%s3 + $0x10] sm:$0xff]
    %v140 = vld [vmem:[%s3 + $0x18] sm:$0xff]
    %v141 = vld [vmem:[%s4] sm:$0xff]
    %v142 = vld [vmem:[%s4 + $0x8] sm:$0xff]
    %v143 = vld [vmem:[%s4 + $0x10] sm:$0xff]
    %v144 = vld [vmem:[%s4 + $0x18] sm:$0xff]
    %146 = vset.pattern.permute.xlu0 0
    %147 = vperm.xlu0 %146, %v141
    %v148 = vpop.permute.xlu0 %147
    %151 = vset.pattern.permute.xlu0 0
    %152 = vperm.xlu0 %151, %v142
    %v153 = vpop.permute.xlu0 %152
    %156 = vset.pattern.permute.xlu0 0
    %157 = vperm.xlu0 %156, %v143
    %v158 = vpop.permute.xlu0 %157
    %161 = vset.pattern.permute.xlu0 0
    %162 = vperm.xlu0 %161, %v144
    %v163 = vpop.permute.xlu0 %162
    %vm165 = vcmask 261120
    %v167 = vsel %vm165, %v137, 0
    %v170 = vsel %vm165, %v138, 0
    %v173 = vsel %vm165, %v139, 0
    %v176 = vsel %vm165, %v140, 0
    %178 = vmatprep.subr.mxu0 0.0
    %179 = vmatpush1.msra.mxu0 0.0
    %180 = vmatprep.subr.mxu0 0.0
    %181 = vmatpush1.msra.mxu0 0.0
    %182 = vmatprep.subr.mxu0 0.0
    %183 = vmatpush1.msra.mxu0 0.0
    %184 = vmatprep.subr.mxu0 0.0
    %185 = vmatpush1.msra.mxu0 0.0
    %186 = vmatprep.subr.mxu0 0.0
    %187 = vmatpush1.msra.mxu0 0.0
    %188 = vmatprep.subr.mxu0 0.0
    %189 = vmatpush1.msra.mxu0 0.0
    %190 = vmatprep.subr.mxu0 0.0
    %191 = vmatpush1.msra.mxu0 0.0
    %192 = vmatprep.subr.mxu0 0.0
    %193 = vmatpush1.msra.mxu0 0.0
    %194 = vmatprep.subr.mxu0 0.0
    %195 = vmatpush1.msra.mxu0 0.0
    %196 = vmatprep.subr.mxu0 0.0
    %197 = vmatpush1.msra.mxu0 0.0
    %198 = vmatprep.subr.mxu0 0.0
    %199 = vmatpush1.msra.mxu0 0.0
    %200 = vmatprep.subr.mxu0 0.0
    %201 = vmatpush1.msra.mxu0 0.0
    %v202 = vand.u32 %v136, 4294901760
    %203 = vmatprep.subr.mxu0 %v202
    %v204 = vand.u32 %v135, 4294901760
    %205 = vmatpush1.msra.mxu0 %v204
    %v206 = vand.u32 %v134, 4294901760
    %207 = vmatprep.subr.mxu0 %v206
    %v208 = vand.u32 %v133, 4294901760
    %209 = vmatpush1.msra.mxu0 %v208
    %v210 = vand.u32 %v132, 4294901760
    %211 = vmatprep.subr.mxu0 %v210
    %v212 = vand.u32 %v131, 4294901760
    %213 = vmatpush1.msra.mxu0 %v212
    %v214 = vand.u32 %v130, 4294901760
    %215 = vmatprep.subr.mxu0 %v214
    %v216 = vand.u32 %v129, 4294901760
    %217 = vmatpush1.msra.mxu0 %v216
    %218 = vmatprep.subr.mxu0 0.0
    %219 = vmatpush2.msra.mxu0 0.0
    %220 = vmatprep.subr.mxu0 0.0
    %221 = vmatpush2.msra.mxu0 0.0
    %222 = vmatprep.subr.mxu0 0.0
    %223 = vmatpush2.msra.mxu0 0.0
    %224 = vmatprep.subr.mxu0 0.0
    %225 = vmatpush2.msra.mxu0 0.0
    %226 = vmatprep.subr.mxu0 0.0
    %227 = vmatpush2.msra.mxu0 0.0
    %228 = vmatprep.subr.mxu0 0.0
    %229 = vmatpush2.msra.mxu0 0.0
    %230 = vmatprep.subr.mxu0 0.0
    %231 = vmatpush2.msra.mxu0 0.0
    %232 = vmatprep.subr.mxu0 0.0
    %233 = vmatpush2.msra.mxu0 0.0
    %234 = vmatprep.subr.mxu0 0.0
    %235 = vmatpush2.msra.mxu0 0.0
    %236 = vmatprep.subr.mxu0 0.0
    %237 = vmatpush2.msra.mxu0 0.0
    %238 = vmatprep.subr.mxu0 0.0
    %239 = vmatpush2.msra.mxu0 0.0
    %240 = vmatprep.subr.mxu0 0.0
    %241 = vmatpush2.msra.mxu0 0.0
    %242 = vmatprep.subr.mxu0 0.0
    %243 = vmatpush2.msra.mxu0 0.0
    %244 = vmatprep.subr.mxu0 0.0
    %245 = vmatpush2.msra.mxu0 0.0
    %246 = vmatprep.subr.mxu0 0.0
    %247 = vmatpush2.msra.mxu0 0.0
    %248 = vmatprep.subr.mxu0 0.0
    %249 = vmatpush2.msra.mxu0 0.0
    %250 = vmatprep.mubr.f32.mxu0 0.0
    %v251 = vand.u32 %v167, 4294901760
    %v252 = vsub.f32 %v167, %v251
    %v253 = vand.u32 %v252, 4294901760
    %v254 = vsub.f32 %v252, %v253
    %v255 = vand.u32 %v254, 4294901760
    %256 = vmatmul.mubr.f32.gmra.mxu0 %v255
    %v257 = vpop.f32.mrf.mxu0
    %v258 = vadd.f32 %v148, %v257
    %v259 = vpop.f32.mrf.mxu0
    %v260 = vadd.f32 %v148, %v259
    %261 = vmatprep.mubr.f32.mxu0 0.0
    %v262 = vand.u32 %v170, 4294901760
    %v263 = vsub.f32 %v170, %v262
    %v264 = vand.u32 %v263, 4294901760
    %v265 = vsub.f32 %v263, %v264
    %v266 = vand.u32 %v265, 4294901760
    %267 = vmatmul.mubr.f32.gmra.mxu0 %v266
    %v268 = vpop.f32.mrf.mxu0
    %v269 = vadd.f32 %v153, %v268
    %v270 = vpop.f32.mrf.mxu0
    %v271 = vadd.f32 %v153, %v270
    %272 = vmatprep.mubr.f32.mxu0 0.0
    %v273 = vand.u32 %v173, 4294901760
    %v274 = vsub.f32 %v173, %v273
    %v275 = vand.u32 %v274, 4294901760
    %v276 = vsub.f32 %v274, %v275
    %v277 = vand.u32 %v276, 4294901760
    %278 = vmatmul.mubr.f32.gmra.mxu0 %v277
    %v279 = vpop.f32.mrf.mxu0
    %v280 = vadd.f32 %v158, %v279
    %v281 = vpop.f32.mrf.mxu0
    %v282 = vadd.f32 %v158, %v281
    %283 = vmatprep.mubr.f32.mxu0 0.0
    %v284 = vand.u32 %v176, 4294901760
    %v285 = vsub.f32 %v176, %v284
    %v286 = vand.u32 %v285, 4294901760
    %v287 = vsub.f32 %v285, %v286
    %v288 = vand.u32 %v287, 4294901760
    %289 = vmatmul.mubr.f32.gmra.mxu0 %v288
    %v290 = vpop.f32.mrf.mxu0
    %v291 = vadd.f32 %v163, %v290
    %v292 = vpop.f32.mrf.mxu0
    %v293 = vadd.f32 %v163, %v292
    %294 = vdwg.mxu0
    %295 = vmatprep.subr.mxu0 0.0
    %296 = vmatpush1.msra.mxu0 0.0
    %297 = vmatprep.subr.mxu0 0.0
    %298 = vmatpush1.msra.mxu0 0.0
    %299 = vmatprep.subr.mxu0 0.0
    %300 = vmatpush1.msra.mxu0 0.0
    %301 = vmatprep.subr.mxu0 0.0
    %302 = vmatpush1.msra.mxu0 0.0
    %303 = vmatprep.subr.mxu0 0.0
    %304 = vmatpush1.msra.mxu0 0.0
    %305 = vmatprep.subr.mxu0 0.0
    %306 = vmatpush1.msra.mxu0 0.0
    %307 = vmatprep.subr.mxu0 0.0
    %308 = vmatpush1.msra.mxu0 0.0
    %309 = vmatprep.subr.mxu0 0.0
    %310 = vmatpush1.msra.mxu0 0.0
    %311 = vmatprep.subr.mxu0 0.0
    %312 = vmatpush1.msra.mxu0 0.0
    %313 = vmatprep.subr.mxu0 0.0
    %314 = vmatpush1.msra.mxu0 0.0
    %315 = vmatprep.subr.mxu0 0.0
    %316 = vmatpush1.msra.mxu0 0.0
    %317 = vmatprep.subr.mxu0 0.0
    %318 = vmatpush1.msra.mxu0 0.0
    %v319 = vand.u32 %v136, 4294901760
    %v320 = vsub.f32 %v136, %v319
    %v321 = vand.u32 %v320, 4294901760
    %v322 = vsub.f32 %v320, %v321
    %v323 = vand.u32 %v322, 4294901760
    %324 = vmatprep.subr.mxu0 %v323
    %v325 = vand.u32 %v135, 4294901760
    %v326 = vsub.f32 %v135, %v325
    %v327 = vand.u32 %v326, 4294901760
    %v328 = vsub.f32 %v326, %v327
    %v329 = vand.u32 %v328, 4294901760
    %330 = vmatpush1.msra.mxu0 %v329
    %v331 = vand.u32 %v134, 4294901760
    %v332 = vsub.f32 %v134, %v331
    %v333 = vand.u32 %v332, 4294901760
    %v334 = vsub.f32 %v332, %v333
    %v335 = vand.u32 %v334, 4294901760
    %336 = vmatprep.subr.mxu0 %v335
    %v337 = vand.u32 %v133, 4294901760
    %v338 = vsub.f32 %v133, %v337
    %v339 = vand.u32 %v338, 4294901760
    %v340 = vsub.f32 %v338, %v339
    %v341 = vand.u32 %v340, 4294901760
    %342 = vmatpush1.msra.mxu0 %v341
    %v343 = vand.u32 %v132, 4294901760
    %v344 = vsub.f32 %v132, %v343
    %v345 = vand.u32 %v344, 4294901760
    %v346 = vsub.f32 %v344, %v345
    %v347 = vand.u32 %v346, 4294901760
    %348 = vmatprep.subr.mxu0 %v347
    %v349 = vand.u32 %v131, 4294901760
    %v350 = vsub.f32 %v131, %v349
    %v351 = vand.u32 %v350, 4294901760
    %v352 = vsub.f32 %v350, %v351
    %v353 = vand.u32 %v352, 4294901760
    %354 = vmatpush1.msra.mxu0 %v353
    %v355 = vand.u32 %v130, 4294901760
    %v356 = vsub.f32 %v130, %v355
    %v357 = vand.u32 %v356, 4294901760
    %v358 = vsub.f32 %v356, %v357
    %v359 = vand.u32 %v358, 4294901760
    %360 = vmatprep.subr.mxu0 %v359
    %v361 = vand.u32 %v129, 4294901760
    %v362 = vsub.f32 %v129, %v361
    %v363 = vand.u32 %v362, 4294901760
    %v364 = vsub.f32 %v362, %v363
    %v365 = vand.u32 %v364, 4294901760
    %366 = vmatpush1.msra.mxu0 %v365
    %367 = vmatprep.subr.mxu0 0.0
    %368 = vmatpush2.msra.mxu0 0.0
    %369 = vmatprep.subr.mxu0 0.0
    %370 = vmatpush2.msra.mxu0 0.0
    %371 = vmatprep.subr.mxu0 0.0
    %372 = vmatpush2.msra.mxu0 0.0
    %373 = vmatprep.subr.mxu0 0.0
    %374 = vmatpush2.msra.mxu0 0.0
    %375 = vmatprep.subr.mxu0 0.0
    %376 = vmatpush2.msra.mxu0 0.0
    %377 = vmatprep.subr.mxu0 0.0
    %378 = vmatpush2.msra.mxu0 0.0
    %379 = vmatprep.subr.mxu0 0.0
    %380 = vmatpush2.msra.mxu0 0.0
    %381 = vmatprep.subr.mxu0 0.0
    %382 = vmatpush2.msra.mxu0 0.0
    %383 = vmatprep.subr.mxu0 0.0
    %384 = vmatpush2.msra.mxu0 0.0
    %385 = vmatprep.subr.mxu0 0.0
    %386 = vmatpush2.msra.mxu0 0.0
    %387 = vmatprep.subr.mxu0 0.0
    %388 = vmatpush2.msra.mxu0 0.0
    %389 = vmatprep.subr.mxu0 0.0
    %390 = vmatpush2.msra.mxu0 0.0
    %391 = vmatprep.subr.mxu0 0.0
    %392 = vmatpush2.msra.mxu0 0.0
    %393 = vmatprep.subr.mxu0 0.0
    %394 = vmatpush2.msra.mxu0 0.0
    %395 = vmatprep.subr.mxu0 0.0
    %396 = vmatpush2.msra.mxu0 0.0
    %397 = vmatprep.subr.mxu0 0.0
    %398 = vmatpush2.msra.mxu0 0.0
    %399 = vmatprep.mubr.f32.mxu0 0.0
    %v400 = vand.u32 %v167, 4294901760
    %401 = vmatmul.mubr.f32.gmra.mxu0 %v400
    %v402 = vpop.f32.mrf.mxu0
    %v403 = vadd.f32 %v258, %v402
    %v404 = vpop.f32.mrf.mxu0
    %v405 = vadd.f32 %v260, %v404
    %406 = vmatprep.mubr.f32.mxu0 0.0
    %v407 = vand.u32 %v170, 4294901760
    %408 = vmatmul.mubr.f32.gmra.mxu0 %v407
    %v409 = vpop.f32.mrf.mxu0
    %v410 = vadd.f32 %v269, %v409
    %v411 = vpop.f32.mrf.mxu0
    %v412 = vadd.f32 %v271, %v411
    %413 = vmatprep.mubr.f32.mxu0 0.0
    %v414 = vand.u32 %v173, 4294901760
    %415 = vmatmul.mubr.f32.gmra.mxu0 %v414
    %v416 = vpop.f32.mrf.mxu0
    %v417 = vadd.f32 %v280, %v416
    %v418 = vpop.f32.mrf.mxu0
    %v419 = vadd.f32 %v282, %v418
    %420 = vmatprep.mubr.f32.mxu0 0.0
    %v421 = vand.u32 %v176, 4294901760
    %422 = vmatmul.mubr.f32.gmra.mxu0 %v421
    %v423 = vpop.f32.mrf.mxu0
    %v424 = vadd.f32 %v291, %v423
    %v425 = vpop.f32.mrf.mxu0
    %v426 = vadd.f32 %v293, %v425
    %427 = vdwg.mxu0
    %428 = vmatprep.subr.mxu0 0.0
    %429 = vmatpush1.msra.mxu0 0.0
    %430 = vmatprep.subr.mxu0 0.0
    %431 = vmatpush1.msra.mxu0 0.0
    %432 = vmatprep.subr.mxu0 0.0
    %433 = vmatpush1.msra.mxu0 0.0
    %434 = vmatprep.subr.mxu0 0.0
    %435 = vmatpush1.msra.mxu0 0.0
    %436 = vmatprep.subr.mxu0 0.0
    %437 = vmatpush1.msra.mxu0 0.0
    %438 = vmatprep.subr.mxu0 0.0
    %439 = vmatpush1.msra.mxu0 0.0
    %440 = vmatprep.subr.mxu0 0.0
    %441 = vmatpush1.msra.mxu0 0.0
    %442 = vmatprep.subr.mxu0 0.0
    %443 = vmatpush1.msra.mxu0 0.0
    %444 = vmatprep.subr.mxu0 0.0
    %445 = vmatpush1.msra.mxu0 0.0
    %446 = vmatprep.subr.mxu0 0.0
    %447 = vmatpush1.msra.mxu0 0.0
    %448 = vmatprep.subr.mxu0 0.0
    %449 = vmatpush1.msra.mxu0 0.0
    %450 = vmatprep.subr.mxu0 0.0
    %451 = vmatpush1.msra.mxu0 0.0
    %v452 = vand.u32 %v136, 4294901760
    %v453 = vsub.f32 %v136, %v452
    %454 = vmatprep.subr.mxu0 %v453
    %v455 = vand.u32 %v135, 4294901760
    %v456 = vsub.f32 %v135, %v455
    %457 = vmatpush1.msra.mxu0 %v456
    %v458 = vand.u32 %v134, 4294901760
    %v459 = vsub.f32 %v134, %v458
    %460 = vmatprep.subr.mxu0 %v459
    %v461 = vand.u32 %v133, 4294901760
    %v462 = vsub.f32 %v133, %v461
    %463 = vmatpush1.msra.mxu0 %v462
    %v464 = vand.u32 %v132, 4294901760
    %v465 = vsub.f32 %v132, %v464
    %466 = vmatprep.subr.mxu0 %v465
    %v467 = vand.u32 %v131, 4294901760
    %v468 = vsub.f32 %v131, %v467
    %469 = vmatpush1.msra.mxu0 %v468
    %v470 = vand.u32 %v130, 4294901760
    %v471 = vsub.f32 %v130, %v470
    %472 = vmatprep.subr.mxu0 %v471
    %v473 = vand.u32 %v129, 4294901760
    %v474 = vsub.f32 %v129, %v473
    %475 = vmatpush1.msra.mxu0 %v474
    %476 = vmatprep.subr.mxu0 0.0
    %477 = vmatpush2.msra.mxu0 0.0
    %478 = vmatprep.subr.mxu0 0.0
    %479 = vmatpush2.msra.mxu0 0.0
    %480 = vmatprep.subr.mxu0 0.0
    %481 = vmatpush2.msra.mxu0 0.0
    %482 = vmatprep.subr.mxu0 0.0
    %483 = vmatpush2.msra.mxu0 0.0
    %484 = vmatprep.subr.mxu0 0.0
    %485 = vmatpush2.msra.mxu0 0.0
    %486 = vmatprep.subr.mxu0 0.0
    %487 = vmatpush2.msra.mxu0 0.0
    %488 = vmatprep.subr.mxu0 0.0
    %489 = vmatpush2.msra.mxu0 0.0
    %490 = vmatprep.subr.mxu0 0.0
    %491 = vmatpush2.msra.mxu0 0.0
    %492 = vmatprep.subr.mxu0 0.0
    %493 = vmatpush2.msra.mxu0 0.0
    %494 = vmatprep.subr.mxu0 0.0
    %495 = vmatpush2.msra.mxu0 0.0
    %496 = vmatprep.subr.mxu0 0.0
    %497 = vmatpush2.msra.mxu0 0.0
    %498 = vmatprep.subr.mxu0 0.0
    %499 = vmatpush2.msra.mxu0 0.0
    %500 = vmatprep.subr.mxu0 0.0
    %501 = vmatpush2.msra.mxu0 0.0
    %502 = vmatprep.subr.mxu0 0.0
    %503 = vmatpush2.msra.mxu0 0.0
    %504 = vmatprep.subr.mxu0 0.0
    %505 = vmatpush2.msra.mxu0 0.0
    %506 = vmatprep.subr.mxu0 0.0
    %507 = vmatpush2.msra.mxu0 0.0
    %508 = vmatprep.mubr.f32.mxu0 0.0
    %v509 = vand.u32 %v167, 4294901760
    %v510 = vsub.f32 %v167, %v509
    %511 = vmatmul.mubr.f32.gmra.mxu0 %v510
    %v512 = vpop.f32.mrf.mxu0
    %v513 = vadd.f32 %v403, %v512
    %v514 = vpop.f32.mrf.mxu0
    %v515 = vadd.f32 %v405, %v514
    %516 = vmatprep.mubr.f32.mxu0 0.0
    %v517 = vand.u32 %v170, 4294901760
    %v518 = vsub.f32 %v170, %v517
    %519 = vmatmul.mubr.f32.gmra.mxu0 %v518
    %v520 = vpop.f32.mrf.mxu0
    %v521 = vadd.f32 %v410, %v520
    %v522 = vpop.f32.mrf.mxu0
    %v523 = vadd.f32 %v412, %v522
    %524 = vmatprep.mubr.f32.mxu0 0.0
    %v525 = vand.u32 %v173, 4294901760
    %v526 = vsub.f32 %v173, %v525
    %527 = vmatmul.mubr.f32.gmra.mxu0 %v526
    %v528 = vpop.f32.mrf.mxu0
    %v529 = vadd.f32 %v417, %v528
    %v530 = vpop.f32.mrf.mxu0
    %v531 = vadd.f32 %v419, %v530
    %532 = vmatprep.mubr.f32.mxu0 0.0
    %v533 = vand.u32 %v176, 4294901760
    %v534 = vsub.f32 %v176, %v533
    %535 = vmatmul.mubr.f32.gmra.mxu0 %v534
    %v536 = vpop.f32.mrf.mxu0
    %v537 = vadd.f32 %v424, %v536
    %v538 = vpop.f32.mrf.mxu0
    %v539 = vadd.f32 %v426, %v538
    %540 = vdwg.mxu0
    %541 = vmatprep.subr.mxu0 0.0
    %542 = vmatpush1.msra.mxu0 0.0
    %543 = vmatprep.subr.mxu0 0.0
    %544 = vmatpush1.msra.mxu0 0.0
    %545 = vmatprep.subr.mxu0 0.0
    %546 = vmatpush1.msra.mxu0 0.0
    %547 = vmatprep.subr.mxu0 0.0
    %548 = vmatpush1.msra.mxu0 0.0
    %549 = vmatprep.subr.mxu0 0.0
    %550 = vmatpush1.msra.mxu0 0.0
    %551 = vmatprep.subr.mxu0 0.0
    %552 = vmatpush1.msra.mxu0 0.0
    %553 = vmatprep.subr.mxu0 0.0
    %554 = vmatpush1.msra.mxu0 0.0
    %555 = vmatprep.subr.mxu0 0.0
    %556 = vmatpush1.msra.mxu0 0.0
    %557 = vmatprep.subr.mxu0 0.0
    %558 = vmatpush1.msra.mxu0 0.0
    %559 = vmatprep.subr.mxu0 0.0
    %560 = vmatpush1.msra.mxu0 0.0
    %561 = vmatprep.subr.mxu0 0.0
    %562 = vmatpush1.msra.mxu0 0.0
    %563 = vmatprep.subr.mxu0 0.0
    %564 = vmatpush1.msra.mxu0 0.0
    %v565 = vand.u32 %v136, 4294901760
    %566 = vmatprep.subr.mxu0 %v565
    %v567 = vand.u32 %v135, 4294901760
    %568 = vmatpush1.msra.mxu0 %v567
    %v569 = vand.u32 %v134, 4294901760
    %570 = vmatprep.subr.mxu0 %v569
    %v571 = vand.u32 %v133, 4294901760
    %572 = vmatpush1.msra.mxu0 %v571
    %v573 = vand.u32 %v132, 4294901760
    %574 = vmatprep.subr.mxu0 %v573
    %v575 = vand.u32 %v131, 4294901760
    %576 = vmatpush1.msra.mxu0 %v575
    %v577 = vand.u32 %v130, 4294901760
    %578 = vmatprep.subr.mxu0 %v577
    %v579 = vand.u32 %v129, 4294901760
    %580 = vmatpush1.msra.mxu0 %v579
    %581 = vmatprep.subr.mxu0 0.0
    %582 = vmatpush2.msra.mxu0 0.0
    %583 = vmatprep.subr.mxu0 0.0
    %584 = vmatpush2.msra.mxu0 0.0
    %585 = vmatprep.subr.mxu0 0.0
    %586 = vmatpush2.msra.mxu0 0.0
    %587 = vmatprep.subr.mxu0 0.0
    %588 = vmatpush2.msra.mxu0 0.0
    %589 = vmatprep.subr.mxu0 0.0
    %590 = vmatpush2.msra.mxu0 0.0
    %591 = vmatprep.subr.mxu0 0.0
    %592 = vmatpush2.msra.mxu0 0.0
    %593 = vmatprep.subr.mxu0 0.0
    %594 = vmatpush2.msra.mxu0 0.0
    %595 = vmatprep.subr.mxu0 0.0
    %596 = vmatpush2.msra.mxu0 0.0
    %597 = vmatprep.subr.mxu0 0.0
    %598 = vmatpush2.msra.mxu0 0.0
    %599 = vmatprep.subr.mxu0 0.0
    %600 = vmatpush2.msra.mxu0 0.0
    %601 = vmatprep.subr.mxu0 0.0
    %602 = vmatpush2.msra.mxu0 0.0
    %603 = vmatprep.subr.mxu0 0.0
    %604 = vmatpush2.msra.mxu0 0.0
    %605 = vmatprep.subr.mxu0 0.0
    %606 = vmatpush2.msra.mxu0 0.0
    %607 = vmatprep.subr.mxu0 0.0
    %608 = vmatpush2.msra.mxu0 0.0
    %609 = vmatprep.subr.mxu0 0.0
    %610 = vmatpush2.msra.mxu0 0.0
    %611 = vmatprep.subr.mxu0 0.0
    %612 = vmatpush2.msra.mxu0 0.0
    %613 = vmatprep.mubr.f32.mxu0 0.0
    %v614 = vand.u32 %v167, 4294901760
    %v615 = vsub.f32 %v167, %v614
    %v616 = vand.u32 %v615, 4294901760
    %617 = vmatmul.mubr.f32.gmra.mxu0 %v616
    %v618 = vpop.f32.mrf.mxu0
    %v619 = vadd.f32 %v513, %v618
    %v620 = vpop.f32.mrf.mxu0
    %v621 = vadd.f32 %v515, %v620
    %622 = vmatprep.mubr.f32.mxu0 0.0
    %v623 = vand.u32 %v170, 4294901760
    %v624 = vsub.f32 %v170, %v623
    %v625 = vand.u32 %v624, 4294901760
    %626 = vmatmul.mubr.f32.gmra.mxu0 %v625
    %v627 = vpop.f32.mrf.mxu0
    %v628 = vadd.f32 %v521, %v627
    %v629 = vpop.f32.mrf.mxu0
    %v630 = vadd.f32 %v523, %v629
    %631 = vmatprep.mubr.f32.mxu0 0.0
    %v632 = vand.u32 %v173, 4294901760
    %v633 = vsub.f32 %v173, %v632
    %v634 = vand.u32 %v633, 4294901760
    %635 = vmatmul.mubr.f32.gmra.mxu0 %v634
    %v636 = vpop.f32.mrf.mxu0
    %v637 = vadd.f32 %v529, %v636
    %v638 = vpop.f32.mrf.mxu0
    %v639 = vadd.f32 %v531, %v638
    %640 = vmatprep.mubr.f32.mxu0 0.0
    %v641 = vand.u32 %v176, 4294901760
    %v642 = vsub.f32 %v176, %v641
    %v643 = vand.u32 %v642, 4294901760
    %644 = vmatmul.mubr.f32.gmra.mxu0 %v643
    %v645 = vpop.f32.mrf.mxu0
    %v646 = vadd.f32 %v537, %v645
    %v647 = vpop.f32.mrf.mxu0
    %v648 = vadd.f32 %v539, %v647
    %649 = vdwg.mxu0
    %650 = vmatprep.subr.mxu0 0.0
    %651 = vmatpush1.msra.mxu0 0.0
    %652 = vmatprep.subr.mxu0 0.0
    %653 = vmatpush1.msra.mxu0 0.0
    %654 = vmatprep.subr.mxu0 0.0
    %655 = vmatpush1.msra.mxu0 0.0
    %656 = vmatprep.subr.mxu0 0.0
    %657 = vmatpush1.msra.mxu0 0.0
    %658 = vmatprep.subr.mxu0 0.0
    %659 = vmatpush1.msra.mxu0 0.0
    %660 = vmatprep.subr.mxu0 0.0
    %661 = vmatpush1.msra.mxu0 0.0
    %662 = vmatprep.subr.mxu0 0.0
    %663 = vmatpush1.msra.mxu0 0.0
    %664 = vmatprep.subr.mxu0 0.0
    %665 = vmatpush1.msra.mxu0 0.0
    %666 = vmatprep.subr.mxu0 0.0
    %667 = vmatpush1.msra.mxu0 0.0
    %668 = vmatprep.subr.mxu0 0.0
    %669 = vmatpush1.msra.mxu0 0.0
    %670 = vmatprep.subr.mxu0 0.0
    %671 = vmatpush1.msra.mxu0 0.0
    %672 = vmatprep.subr.mxu0 0.0
    %673 = vmatpush1.msra.mxu0 0.0
    %v674 = vand.u32 %v136, 4294901760
    %v675 = vsub.f32 %v136, %v674
    %v676 = vand.u32 %v675, 4294901760
    %677 = vmatprep.subr.mxu0 %v676
    %v678 = vand.u32 %v135, 4294901760
    %v679 = vsub.f32 %v135, %v678
    %v680 = vand.u32 %v679, 4294901760
    %681 = vmatpush1.msra.mxu0 %v680
    %v682 = vand.u32 %v134, 4294901760
    %v683 = vsub.f32 %v134, %v682
    %v684 = vand.u32 %v683, 4294901760
    %685 = vmatprep.subr.mxu0 %v684
    %v686 = vand.u32 %v133, 4294901760
    %v687 = vsub.f32 %v133, %v686
    %v688 = vand.u32 %v687, 4294901760
    %689 = vmatpush1.msra.mxu0 %v688
    %v690 = vand.u32 %v132, 4294901760
    %v691 = vsub.f32 %v132, %v690
    %v692 = vand.u32 %v691, 4294901760
    %693 = vmatprep.subr.mxu0 %v692
    %v694 = vand.u32 %v131, 4294901760
    %v695 = vsub.f32 %v131, %v694
    %v696 = vand.u32 %v695, 4294901760
    %697 = vmatpush1.msra.mxu0 %v696
    %v698 = vand.u32 %v130, 4294901760
    %v699 = vsub.f32 %v130, %v698
    %v700 = vand.u32 %v699, 4294901760
    %701 = vmatprep.subr.mxu0 %v700
    %v702 = vand.u32 %v129, 4294901760
    %v703 = vsub.f32 %v129, %v702
    %v704 = vand.u32 %v703, 4294901760
    %705 = vmatpush1.msra.mxu0 %v704
    %706 = vmatprep.subr.mxu0 0.0
    %707 = vmatpush2.msra.mxu0 0.0
    %708 = vmatprep.subr.mxu0 0.0
    %709 = vmatpush2.msra.mxu0 0.0
    %710 = vmatprep.subr.mxu0 0.0
    %711 = vmatpush2.msra.mxu0 0.0
    %712 = vmatprep.subr.mxu0 0.0
    %713 = vmatpush2.msra.mxu0 0.0
    %714 = vmatprep.subr.mxu0 0.0
    %715 = vmatpush2.msra.mxu0 0.0
    %716 = vmatprep.subr.mxu0 0.0
    %717 = vmatpush2.msra.mxu0 0.0
    %718 = vmatprep.subr.mxu0 0.0
    %719 = vmatpush2.msra.mxu0 0.0
    %720 = vmatprep.subr.mxu0 0.0
    %721 = vmatpush2.msra.mxu0 0.0
    %722 = vmatprep.subr.mxu0 0.0
    %723 = vmatpush2.msra.mxu0 0.0
    %724 = vmatprep.subr.mxu0 0.0
    %725 = vmatpush2.msra.mxu0 0.0
    %726 = vmatprep.subr.mxu0 0.0
    %727 = vmatpush2.msra.mxu0 0.0
    %728 = vmatprep.subr.mxu0 0.0
    %729 = vmatpush2.msra.mxu0 0.0
    %730 = vmatprep.subr.mxu0 0.0
    %731 = vmatpush2.msra.mxu0 0.0
    %732 = vmatprep.subr.mxu0 0.0
    %733 = vmatpush2.msra.mxu0 0.0
    %734 = vmatprep.subr.mxu0 0.0
    %735 = vmatpush2.msra.mxu0 0.0
    %736 = vmatprep.subr.mxu0 0.0
    %737 = vmatpush2.msra.mxu0 0.0
    %738 = vmatprep.mubr.f32.mxu0 0.0
    %v739 = vand.u32 %v167, 4294901760
    %740 = vmatmul.mubr.f32.gmra.mxu0 %v739
    %v741 = vpop.f32.mrf.mxu0
    %v742 = vadd.f32 %v619, %v741
    %v743 = vpop.f32.mrf.mxu0
    %v744 = vadd.f32 %v621, %v743
    %745 = vmatprep.mubr.f32.mxu0 0.0
    %v746 = vand.u32 %v170, 4294901760
    %747 = vmatmul.mubr.f32.gmra.mxu0 %v746
    %v748 = vpop.f32.mrf.mxu0
    %v749 = vadd.f32 %v628, %v748
    %v750 = vpop.f32.mrf.mxu0
    %v751 = vadd.f32 %v630, %v750
    %752 = vmatprep.mubr.f32.mxu0 0.0
    %v753 = vand.u32 %v173, 4294901760
    %754 = vmatmul.mubr.f32.gmra.mxu0 %v753
    %v755 = vpop.f32.mrf.mxu0
    %v756 = vadd.f32 %v637, %v755
    %v757 = vpop.f32.mrf.mxu0
    %v758 = vadd.f32 %v639, %v757
    %759 = vmatprep.mubr.f32.mxu0 0.0
    %v760 = vand.u32 %v176, 4294901760
    %761 = vmatmul.mubr.f32.gmra.mxu0 %v760
    %v762 = vpop.f32.mrf.mxu0
    %v763 = vadd.f32 %v646, %v762
    %v764 = vpop.f32.mrf.mxu0
    %v765 = vadd.f32 %v648, %v764
    %766 = vdwg.mxu0
    %767 = vmatprep.subr.mxu0 0.0
    %768 = vmatpush1.msra.mxu0 0.0
    %769 = vmatprep.subr.mxu0 0.0
    %770 = vmatpush1.msra.mxu0 0.0
    %771 = vmatprep.subr.mxu0 0.0
    %772 = vmatpush1.msra.mxu0 0.0
    %773 = vmatprep.subr.mxu0 0.0
    %774 = vmatpush1.msra.mxu0 0.0
    %775 = vmatprep.subr.mxu0 0.0
    %776 = vmatpush1.msra.mxu0 0.0
    %777 = vmatprep.subr.mxu0 0.0
    %778 = vmatpush1.msra.mxu0 0.0
    %779 = vmatprep.subr.mxu0 0.0
    %780 = vmatpush1.msra.mxu0 0.0
    %781 = vmatprep.subr.mxu0 0.0
    %782 = vmatpush1.msra.mxu0 0.0
    %783 = vmatprep.subr.mxu0 0.0
    %784 = vmatpush1.msra.mxu0 0.0
    %785 = vmatprep.subr.mxu0 0.0
    %786 = vmatpush1.msra.mxu0 0.0
    %787 = vmatprep.subr.mxu0 0.0
    %788 = vmatpush1.msra.mxu0 0.0
    %789 = vmatprep.subr.mxu0 0.0
    %790 = vmatpush1.msra.mxu0 0.0
    %v791 = vand.u32 %v136, 4294901760
    %792 = vmatprep.subr.mxu0 %v791
    %v793 = vand.u32 %v135, 4294901760
    %794 = vmatpush1.msra.mxu0 %v793
    %v795 = vand.u32 %v134, 4294901760
    %796 = vmatprep.subr.mxu0 %v795
    %v797 = vand.u32 %v133, 4294901760
    %798 = vmatpush1.msra.mxu0 %v797
    %v799 = vand.u32 %v132, 4294901760
    %800 = vmatprep.subr.mxu0 %v799
    %v801 = vand.u32 %v131, 4294901760
    %802 = vmatpush1.msra.mxu0 %v801
    %v803 = vand.u32 %v130, 4294901760
    %804 = vmatprep.subr.mxu0 %v803
    %v805 = vand.u32 %v129, 4294901760
    %806 = vmatpush1.msra.mxu0 %v805
    %807 = vmatprep.subr.mxu0 0.0
    %808 = vmatpush2.msra.mxu0 0.0
    %809 = vmatprep.subr.mxu0 0.0
    %810 = vmatpush2.msra.mxu0 0.0
    %811 = vmatprep.subr.mxu0 0.0
    %812 = vmatpush2.msra.mxu0 0.0
    %813 = vmatprep.subr.mxu0 0.0
    %814 = vmatpush2.msra.mxu0 0.0
    %815 = vmatprep.subr.mxu0 0.0
    %816 = vmatpush2.msra.mxu0 0.0
    %817 = vmatprep.subr.mxu0 0.0
    %818 = vmatpush2.msra.mxu0 0.0
    %819 = vmatprep.subr.mxu0 0.0
    %820 = vmatpush2.msra.mxu0 0.0
    %821 = vmatprep.subr.mxu0 0.0
    %822 = vmatpush2.msra.mxu0 0.0
    %823 = vmatprep.subr.mxu0 0.0
    %824 = vmatpush2.msra.mxu0 0.0
    %825 = vmatprep.subr.mxu0 0.0
    %826 = vmatpush2.msra.mxu0 0.0
    %827 = vmatprep.subr.mxu0 0.0
    %828 = vmatpush2.msra.mxu0 0.0
    %829 = vmatprep.subr.mxu0 0.0
    %830 = vmatpush2.msra.mxu0 0.0
    %831 = vmatprep.subr.mxu0 0.0
    %832 = vmatpush2.msra.mxu0 0.0
    %833 = vmatprep.subr.mxu0 0.0
    %834 = vmatpush2.msra.mxu0 0.0
    %835 = vmatprep.subr.mxu0 0.0
    %836 = vmatpush2.msra.mxu0 0.0
    %837 = vmatprep.subr.mxu0 0.0
    %838 = vmatpush2.msra.mxu0 0.0
    %839 = vmatprep.mubr.f32.mxu0 0.0
    %v840 = vand.u32 %v167, 4294901760
    %841 = vmatmul.mubr.f32.gmra.mxu0 %v840
    %v842 = vpop.f32.mrf.mxu0
    %v843 = vadd.f32 %v742, %v842
    %v844 = vpop.f32.mrf.mxu0
    %v845 = vadd.f32 %v744, %v844
    %846 = vmatprep.mubr.f32.mxu0 0.0
    %v847 = vand.u32 %v170, 4294901760
    %848 = vmatmul.mubr.f32.gmra.mxu0 %v847
    %v849 = vpop.f32.mrf.mxu0
    %v850 = vadd.f32 %v749, %v849
    %v851 = vpop.f32.mrf.mxu0
    %v852 = vadd.f32 %v751, %v851
    %853 = vmatprep.mubr.f32.mxu0 0.0
    %v854 = vand.u32 %v173, 4294901760
    %855 = vmatmul.mubr.f32.gmra.mxu0 %v854
    %v856 = vpop.f32.mrf.mxu0
    %v857 = vadd.f32 %v756, %v856
    %v858 = vpop.f32.mrf.mxu0
    %v859 = vadd.f32 %v758, %v858
    %860 = vmatprep.mubr.f32.mxu0 0.0
    %v861 = vand.u32 %v176, 4294901760
    %862 = vmatmul.mubr.f32.gmra.mxu0 %v861
    %v863 = vpop.f32.mrf.mxu0
    %v864 = vadd.f32 %v763, %v863
    %v865 = vpop.f32.mrf.mxu0
    %v866 = vadd.f32 %v765, %v865
    %867 = vdwg.mxu0
    %v868 = vmul.f32 %v843, 0.5
    %v869 = vmul.f32 %v845, 0.5
    %v870 = vmul.f32 %v850, 0.5
    %v871 = vmul.f32 %v852, 0.5
    %v872 = vmul.f32 %v857, 0.5
    %v873 = vmul.f32 %v859, 0.5
    %v874 = vmul.f32 %v864, 0.5
    %v875 = vmul.f32 %v866, 0.5
    %v876 = vtanh.pop %v868
    %v877 = vtanh.pop %v869
    %v878 = vtanh.pop %v870
    %v879 = vtanh.pop %v871
    %v880 = vtanh.pop %v872
    %v881 = vtanh.pop %v873
    %v882 = vtanh.pop %v874
    %v883 = vtanh.pop %v875
    %v884 = vadd.f32 %v876, 1.0
    %v885 = vadd.f32 %v877, 1.0
    %v886 = vadd.f32 %v878, 1.0
    %v887 = vadd.f32 %v879, 1.0
    %v888 = vadd.f32 %v880, 1.0
    %v889 = vadd.f32 %v881, 1.0
    %v890 = vadd.f32 %v882, 1.0
    %v891 = vadd.f32 %v883, 1.0
    %v892 = vmul.f32 %v884, 0.5
    %v893 = vmul.f32 %v885, 0.5
    %v894 = vmul.f32 %v886, 0.5
    %v895 = vmul.f32 %v887, 0.5
    %v896 = vmul.f32 %v888, 0.5
    %v897 = vmul.f32 %v889, 0.5
    %v898 = vmul.f32 %v890, 0.5
    %v899 = vmul.f32 %v891, 0.5
    %v900 = vld [vmem:[%s5] sm:$0xff]
    %v901 = vld [vmem:[%s5 + $0x8] sm:$0xff]
    %v902 = vld [vmem:[%s5 + $0x10] sm:$0xff]
    %v903 = vld [vmem:[%s5 + $0x18] sm:$0xff]
    %905 = vset.pattern.permute.xlu0 0
    %906 = vperm.xlu0 %905, %v900
    %v907 = vpop.permute.xlu0 %906
    %910 = vset.pattern.permute.xlu0 0
    %911 = vperm.xlu0 %910, %v901
    %v912 = vpop.permute.xlu0 %911
    %915 = vset.pattern.permute.xlu0 0
    %916 = vperm.xlu0 %915, %v902
    %v917 = vpop.permute.xlu0 %916
    %920 = vset.pattern.permute.xlu0 0
    %921 = vperm.xlu0 %920, %v903
    %v922 = vpop.permute.xlu0 %921
    %v924 = vmul.f32 %v907, %v892
    %v925 = vmul.f32 %v907, %v893
    %v926 = vmul.f32 %v912, %v894
    %v927 = vmul.f32 %v912, %v895
    %v928 = vmul.f32 %v917, %v896
    %v929 = vmul.f32 %v917, %v897
    %v930 = vmul.f32 %v922, %v898
    %v931 = vmul.f32 %v922, %v899
    %v932 = vadd.f32 %v924, %v926
    %v933 = vadd.f32 %v932, %v928
    %v934 = vadd.f32 %v933, %v930
    %v935 = vrot.slane %v934, 4
    %v936 = vadd.f32 %v934, %v935
    %v937 = vrot.slane %v936, 2
    %v938 = vadd.f32 %v936, %v937
    %v939 = vrot.slane %v938, 1
    %v940 = vadd.f32 %v938, %v939
    %v941 = vadd.f32 %v925, %v927
    %v942 = vadd.f32 %v941, %v929
    %v943 = vadd.f32 %v942, %v931
    %v944 = vrot.slane %v943, 4
    %v945 = vadd.f32 %v943, %v944
    %v946 = vrot.slane %v945, 2
    %v947 = vadd.f32 %v945, %v946
    %v948 = vrot.slane %v947, 1
    %v949 = vadd.f32 %v947, %v948
    %v950 = vld [vmem:[#allocation2] sm:$0x1]
    %952 = vset.pattern.permute.xlu0 0
    %953 = vperm.xlu0 %952, %v950
    %v954 = vpop.permute.xlu0 %953
    %v956 = vlaneseq
    %v957 = vshrl.u32 %v956, 7
    %v958 = vsub.s32 0, %v957
    %v959 = vrot.slane %v954, %v958
    %v960 = vadd.f32 %v940, %v959
    %v961 = vadd.f32 %v949, %v959
    %v964 = vcombine.low %v960, %v961
    %v966 = vunpack.c.l.s4 1966171168
    %v967 = vunpack.c.0.s8 %v966
    %v968 = vlaneseq
    %v969 = vshrl.u32 %v968, 7
    %v970 = vsub.s32 %v967, %v969
    %v971 = vrot.slane %v964, %v970
    %v973 = vunpack.c.l.s4 1966171168
    %v974 = vunpack.c.0.s8 %v973
    %v975 = vlaneseq
    %v976 = vshrl.u32 %v975, 7
    %v977 = vsub.s32 %v974, %v976
    %v978 = vrot.slane %v971, %v977
    %v980 = vlaneseq
    %vm981 = vcmp.ge.s32.totalorder %v980, 0
    %vm982 = vcmp.lt.s32.totalorder %v980, 256
    %vm983 = vmand %vm981, %vm982
    %984 = vst.msk [vmem:[#allocation3] sm:$0x3] %vm983, %v978
    // Predicated region
    $region30: #{tpu_custom_call.1} parent=1 // pred_check
      _
    $region31: #{tpu_custom_call.1} parent=1 // pred_check_branch
      %986 = sbr.rel (0) target = $region33
    $region32: #{tpu_custom_call.1} parent=1 // pred_region
      %s988 = ssub.s32 32, 32
      %989 = vsyncadd [#allocation4], %s988
      %s991 = sshll.u32 [#allocation3], 4
      %s992 = int_to_ptr.vmem [resolvable:$true] %s991
      %994 = dma.vmem_to_hbm [thread:$0]  %s992, 32, %s7, [#allocation4]
    $region33: #{tpu_custom_call.1} parent=1 // pred_fallthru
      _
    // Predicated region
    $region34: #{tpu_custom_call.1} parent=1 // pred_check
      _
    $region35: #{tpu_custom_call.1} parent=1 // pred_check_branch
      %996 = sbr.rel (0) target = $region37
    $region36: #{tpu_custom_call.1} parent=1 // pred_region
      %997 = dma.done [#allocation4], 32
    $region37: #{tpu_custom_call.1} parent=1 // pred_fallthru
      _
    %998 = vsyncpa [#allocation4], 1

</llo_original>
